<compile_context>
chip_gen: v7x
topology: tpu7x:2x2x1
jax: 0.10.0
libtpu: 0.0.40
codegen_flags: <defaults>
</compile_context>

<pallas_src>
import math

import jax
import jax.numpy as jnp
from jax.experimental import pallas as pl
from jax.experimental.pallas import tpu as pltpu


def _make_divisible(v, divisor, min_value=None):
    if min_value is None:
        min_value = divisor
    new_v = max(min_value, int(v + divisor / 2) // divisor * divisor)
    if new_v < 0.9 * v:
        new_v += divisor
    return new_v


def _se_kernel(alpha_ref, x_ref, w1_ref, b1_ref, w2_ref, b2_ref, o_ref):
    # x block: (Nb, C, HW) in the streaming dtype; HW sits on the lane axis.
    x = x_ref[...]
    c = x.shape[1]
    r = w1_ref.shape[0]

    # Global average pool over spatial (AdaptiveAvgPool2d(1)); f32 accumulation.
    pooled = jnp.mean(x.astype(jnp.float32), axis=-1)               # (Nb, C)

    # Small C/R: VPU broadcast-multiply + lane reduce; big stages: MXU.
    small = (c <= 128) and (r <= 128)

    # conv_reduce: se[n, r] = sum_c pooled[n, c] * w1[r, c] + b1[r]
    if small:
        se = jnp.sum(pooled[:, None, :] * w1_ref[...][None, :, :], axis=-1) \
             + b1_ref[...]                                          # (Nb, R)
    else:
        se = jax.lax.dot_general(
            pooled, w1_ref[...], (((1,), (1,)), ((), ())),
            preferred_element_type=jnp.float32) + b1_ref[...]

    # PReLU with a single shared parameter (nn.PReLU() default).
    alpha = alpha_ref[0]
    se = jnp.where(se >= 0.0, se, alpha * se)

    # conv_expand: g[n, c] = sum_r se[n, r] * w2[c, r] + b2[c]
    if small:
        se = jnp.sum(se[:, None, :] * w2_ref[...][None, :, :], axis=-1) \
             + b2_ref[...]                                          # (Nb, C)
    else:
        se = jax.lax.dot_general(
            se, w2_ref[...], (((1,), (1,)), ((), ())),
            preferred_element_type=jnp.float32) + b2_ref[...]

    # hard_sigmoid gate: relu6(x + 3) / 6, then scale the input.
    gate = jnp.clip(se + 3.0, 0.0, 6.0) * (1.0 / 6.0)               # (Nb, C) f32
    # Scale in the streamed dtype (no full-tile f32 copy on the store path).
    o_ref[...] = (x * gate.astype(x.dtype)[:, :, None]).astype(o_ref.dtype)


_VMEM_LIMIT_BYTES = 32 * 1024 * 1024     # explicit; safe on v5e/v6e/v7x
_X_BLOCK_BUDGET_BYTES = 4 * 1024 * 1024  # per x block (4x that when double-buffered in+out)
_X_BLOCK_TARGET_BYTES = 1 * 1024 * 1024  # ~where per-step overhead stops mattering


def _choose_block_batch(n, c, hw, itemsize):
    """Pick how many batch elements each grid step processes.

    Keeps the double-buffered x-in + out footprint (4 * block bytes) plus the
    small f32 temporaries comfortably inside the explicit VMEM limit on all
    generations (v7x has only 64 MiB physical VMEM), prefers leaving >= 2 grid
    steps so v7x's two TensorCores both get work, and otherwise grows the
    block until the ~0.35us per-step overhead is amortized.
    """
    per_batch = c * hw * itemsize
    divisors = [d for d in range(1, n + 1) if n % d == 0]
    fits = [d for d in divisors if d * per_batch <= _X_BLOCK_BUDGET_BYTES] or [1]
    preferred = [d for d in fits if n // d >= 2] or fits
    for d in preferred:
        if d * per_batch >= _X_BLOCK_TARGET_BYTES:
            return d
    return preferred[-1]


def squeeze_excite(x_nchw, w_reduce, b_reduce, prelu_alpha, w_expand, b_expand,
                   *, block_batch=None):
    """SqueezeExcite forward.

    x_nchw: [N, C, H, W] (any float dtype; streamed HBM<->VMEM in that dtype).
    w_reduce: [R, C], b_reduce: [R]   (1x1 conv weights with the kxk squeezed)
    w_expand: [C, R], b_expand: [C]
    prelu_alpha: scalar (nn.PReLU() single shared parameter).
    """
    N, C, H, W = x_nchw.shape
    R = w_reduce.shape[0]
    HW = H * W

    x = x_nchw.reshape(N, C, HW)                       # keep native dtype
    w1 = jnp.asarray(w_reduce, jnp.float32)            # (R, C)
    w2 = jnp.asarray(w_expand, jnp.float32)            # (C, R)
    b1 = jnp.asarray(b_reduce, jnp.float32).reshape(1, R)
    b2 = jnp.asarray(b_expand, jnp.float32).reshape(1, C)
    alpha = jnp.asarray(prelu_alpha, jnp.float32).reshape(1)

    nb = block_batch if block_batch is not None else _choose_block_batch(
        N, C, HW, x.dtype.itemsize)
    assert N % nb == 0, "block_batch must divide N"

    out = pl.pallas_call(
        _se_kernel,
        out_shape=jax.ShapeDtypeStruct((N, C, HW), x.dtype),
        grid_spec=pltpu.PrefetchScalarGridSpec(
            num_scalar_prefetch=0,
            grid=(N // nb,),
            in_specs=[
                pl.BlockSpec(memory_space=pltpu.SMEM),           # PReLU alpha scalar
                pl.BlockSpec((nb, C, HW), lambda n: (n, 0, 0)),  # x batch block
                pl.BlockSpec((R, C), lambda n: (0, 0)),          # w_reduce (resident)
                pl.BlockSpec((1, R), lambda n: (0, 0)),          # b_reduce
                pl.BlockSpec((C, R), lambda n: (0, 0)),          # w_expand (resident)
                pl.BlockSpec((1, C), lambda n: (0, 0)),          # b_expand
            ],
            out_specs=pl.BlockSpec((nb, C, HW), lambda n: (n, 0, 0)),
        ),
        compiler_params=pltpu.CompilerParams(
            dimension_semantics=("parallel",),
            vmem_limit_bytes=_VMEM_LIMIT_BYTES,
        ),
    )(alpha, x, w1, b1, w2, b2)

    return out.reshape(N, C, H, W)


def _reference(x, w1, b1, alpha, w2, b2):
    # Pure-JAX reference mirroring the PyTorch forward.
    pooled = jnp.mean(x, axis=(2, 3), keepdims=True)                 # (N,C,1,1)
    se = jnp.einsum('nchw,rc->nrhw', pooled, w1) + b1[None, :, None, None]
    se = jnp.where(se >= 0, se, alpha * se)
    se = jnp.einsum('nrhw,cr->nchw', se, w2) + b2[None, :, None, None]
    gate = jnp.clip(se + 3.0, 0.0, 6.0) / 6.0
    return x * gate


if __name__ == "__main__":
    key = jax.random.PRNGKey(0)
    N, C, H, W = 2, 4, 16, 16
    in_chs = C
    reduced_chs = _make_divisible(in_chs * 0.25, 4)   # -> 4 for C=4

    k1, k2, k3, k4, k5 = jax.random.split(key, 5)
    x = jax.random.normal(k1, (N, C, H, W), dtype=jnp.float32)

    # Deterministic synthetic parameters (Conv2d 1x1 weights, kxk squeezed).
    fan_in1 = in_chs
    w_reduce = jax.random.uniform(k2, (reduced_chs, in_chs), jnp.float32,
                                  -1.0 / math.sqrt(fan_in1), 1.0 / math.sqrt(fan_in1))
    b_reduce = jax.random.uniform(k3, (reduced_chs,), jnp.float32,
                                  -1.0 / math.sqrt(fan_in1), 1.0 / math.sqrt(fan_in1))
    fan_in2 = reduced_chs
    w_expand = jax.random.uniform(k4, (in_chs, reduced_chs), jnp.float32,
                                  -1.0 / math.sqrt(fan_in2), 1.0 / math.sqrt(fan_in2))
    b_expand = jax.random.uniform(k5, (in_chs,), jnp.float32,
                                  -1.0 / math.sqrt(fan_in2), 1.0 / math.sqrt(fan_in2))
    prelu_alpha = jnp.float32(0.25)  # nn.PReLU() default init

    # f32 run (matches the PyTorch module's default dtype).
    out = squeeze_excite(x, w_reduce, b_reduce, prelu_alpha, w_expand, b_expand)
    out = jax.block_until_ready(out)
    ref = _reference(x, w_reduce, b_reduce, prelu_alpha, w_expand, b_expand)
    assert out.shape == (N, C, H, W)
    assert jnp.allclose(out, ref, atol=1e-5, rtol=1e-5), "f32 mismatch vs reference"

    # bf16 streaming run: x/out stay bf16 on the HBM path; SE math is f32 in-kernel.
    x_bf16 = x.astype(jnp.bfloat16)
    out_bf16 = squeeze_excite(x_bf16, w_reduce, b_reduce, prelu_alpha,
                              w_expand, b_expand)
    out_bf16 = jax.block_until_ready(out_bf16)
    assert out_bf16.dtype == jnp.bfloat16
    ref_bf16 = _reference(x_bf16.astype(jnp.float32), w_reduce, b_reduce,
                          prelu_alpha, w_expand, b_expand)
    assert jnp.allclose(out_bf16.astype(jnp.float32), ref_bf16,
                        atol=3e-2, rtol=3e-2), "bf16 mismatch vs reference"

    print("KERNEL_OK")
</pallas_src>

<mosaic_0001>
module attributes {stable_mosaic.version = 11 : i64} {
  func.func @_se_kernel(%arg0: i32, %arg1: memref<1xf32, #tpu.memory_space<smem>>, %arg2: memref<1x4x256xf32, #tpu.memory_space<vmem>>, %arg3: memref<4x4xf32, #tpu.memory_space<vmem>>, %arg4: memref<1x4xf32, #tpu.memory_space<vmem>>, %arg5: memref<4x4xf32, #tpu.memory_space<vmem>>, %arg6: memref<1x4xf32, #tpu.memory_space<vmem>>, %arg7: memref<1x4x256xf32, #tpu.memory_space<vmem>>) attributes {dimension_semantics = [#tpu.dimension_semantics<parallel>], iteration_bounds = array<i64: 2>, scalar_prefetch = 0 : i64, scratch_operands = 0 : i64, tpu.core_type = #tpu.core_type<tc>, window_params = [{transform_indices = @transform_0, window_bounds = array<i64: 1>}, {transform_indices = @transform_1, window_bounds = array<i64: 1, 4, 256>}, {pipeline_mode = #tpu.pipeline_mode<synchronous>, transform_indices = @transform_2, window_bounds = array<i64: 4, 4>}, {pipeline_mode = #tpu.pipeline_mode<synchronous>, transform_indices = @transform_3, window_bounds = array<i64: 1, 4>}, {pipeline_mode = #tpu.pipeline_mode<synchronous>, transform_indices = @transform_4, window_bounds = array<i64: 4, 4>}, {pipeline_mode = #tpu.pipeline_mode<synchronous>, transform_indices = @transform_5, window_bounds = array<i64: 1, 4>}, {transform_indices = @transform_6, window_bounds = array<i64: 1, 4, 256>}]} {
    %c0 = arith.constant 0 : index
    %c0_0 = arith.constant 0 : index
    %c0_1 = arith.constant 0 : index
    %0 = vector.load %arg2[%c0, %c0_0, %c0_1] : memref<1x4x256xf32, #tpu.memory_space<vmem>>, vector<1x4x256xf32>
    %cst = arith.constant dense<0.000000e+00> : vector<1x4xf32>
    %1 = vector.multi_reduction <add>, %0, %cst [2] : vector<1x4x256xf32> to vector<1x4xf32>
    %cst_2 = arith.constant 2.560000e+02 : f32
    %2 = vector.broadcast %cst_2 : f32 to vector<1x4xf32>
    %3 = arith.divf %1, %2 : vector<1x4xf32>
    %4 = vector.shape_cast %3 : vector<1x4xf32> to vector<1x1x4xf32>
    %c0_3 = arith.constant 0 : index
    %c0_4 = arith.constant 0 : index
    %5 = vector.load %arg3[%c0_3, %c0_4] : memref<4x4xf32, #tpu.memory_space<vmem>>, vector<4x4xf32>
    %6 = vector.shape_cast %5 : vector<4x4xf32> to vector<1x4x4xf32>
    %7 = vector.broadcast %4 : vector<1x1x4xf32> to vector<1x4x4xf32>
    %8 = arith.mulf %7, %6 : vector<1x4x4xf32>
    %cst_5 = arith.constant dense<0.000000e+00> : vector<1x4xf32>
    %9 = vector.multi_reduction <add>, %8, %cst_5 [2] : vector<1x4x4xf32> to vector<1x4xf32>
    %c0_6 = arith.constant 0 : index
    %c0_7 = arith.constant 0 : index
    %10 = vector.load %arg4[%c0_6, %c0_7] : memref<1x4xf32, #tpu.memory_space<vmem>>, vector<1x4xf32>
    %11 = arith.addf %9, %10 : vector<1x4xf32>
    %c0_8 = arith.constant 0 : index
    %12 = memref.load %arg1[%c0_8] : memref<1xf32, #tpu.memory_space<smem>>
    %cst_9 = arith.constant 0.000000e+00 : f32
    %13 = vector.broadcast %cst_9 : f32 to vector<1x4xf32>
    %14 = arith.cmpf oge, %11, %13 : vector<1x4xf32>
    %15 = vector.broadcast %12 : f32 to vector<1x4xf32>
    %16 = arith.mulf %15, %11 : vector<1x4xf32>
    %17 = arith.select %14, %11, %16 : vector<1x4xi1>, vector<1x4xf32>
    %18 = vector.shape_cast %17 : vector<1x4xf32> to vector<1x1x4xf32>
    %c0_10 = arith.constant 0 : index
    %c0_11 = arith.constant 0 : index
    %19 = vector.load %arg5[%c0_10, %c0_11] : memref<4x4xf32, #tpu.memory_space<vmem>>, vector<4x4xf32>
    %20 = vector.shape_cast %19 : vector<4x4xf32> to vector<1x4x4xf32>
    %21 = vector.broadcast %18 : vector<1x1x4xf32> to vector<1x4x4xf32>
    %22 = arith.mulf %21, %20 : vector<1x4x4xf32>
    %cst_12 = arith.constant dense<0.000000e+00> : vector<1x4xf32>
    %23 = vector.multi_reduction <add>, %22, %cst_12 [2] : vector<1x4x4xf32> to vector<1x4xf32>
    %c0_13 = arith.constant 0 : index
    %c0_14 = arith.constant 0 : index
    %24 = vector.load %arg6[%c0_13, %c0_14] : memref<1x4xf32, #tpu.memory_space<vmem>>, vector<1x4xf32>
    %25 = arith.addf %23, %24 : vector<1x4xf32>
    %cst_15 = arith.constant 3.000000e+00 : f32
    %26 = vector.broadcast %cst_15 : f32 to vector<1x4xf32>
    %27 = arith.addf %25, %26 : vector<1x4xf32>
    %cst_16 = arith.constant 0.000000e+00 : f32
    %cst_17 = arith.constant 6.000000e+00 : f32
    %28 = vector.broadcast %cst_16 : f32 to vector<1x4xf32>
    %29 = arith.maximumf %28, %27 : vector<1x4xf32>
    %30 = vector.broadcast %cst_17 : f32 to vector<1x4xf32>
    %31 = arith.minimumf %30, %29 : vector<1x4xf32>
    %cst_18 = arith.constant 0.166666672 : f32
    %32 = vector.broadcast %cst_18 : f32 to vector<1x4xf32>
    %33 = arith.mulf %31, %32 : vector<1x4xf32>
    %34 = vector.shape_cast %33 : vector<1x4xf32> to vector<1x4x1xf32>
    %35 = vector.broadcast %34 : vector<1x4x1xf32> to vector<1x4x256xf32>
    %36 = arith.mulf %0, %35 : vector<1x4x256xf32>
    %c0_19 = arith.constant 0 : index
    %c0_20 = arith.constant 0 : index
    %c0_21 = arith.constant 0 : index
    %37 = vector.load %arg7[%c0_19, %c0_20, %c0_21] : memref<1x4x256xf32, #tpu.memory_space<vmem>>, vector<1x4x256xf32>
    tpu.vector_store %arg7[%c0_19, %c0_20, %c0_21], %36 {strides = array<i32>} : memref<1x4x256xf32, #tpu.memory_space<vmem>>, vector<1x4x256xf32>,
    return
  }
  func.func @transform_0(%arg0: i32) -> i32 {
    %c0_i32 = arith.constant 0 : i32
    %c0_i32_0 = arith.constant 0 : i32
    return %c0_i32 : i32
  }
  func.func @transform_1(%arg0: i32) -> (i32, i32, i32) {
    %c0_i32 = arith.constant 0 : i32
    %c0_i32_0 = arith.constant 0 : i32
    %c0_i32_1 = arith.constant 0 : i32
    return %arg0, %c0_i32, %c0_i32_0 : i32, i32, i32
  }
  func.func @transform_2(%arg0: i32) -> (i32, i32) {
    %c0_i32 = arith.constant 0 : i32
    %c0_i32_0 = arith.constant 0 : i32
    %c0_i32_1 = arith.constant 0 : i32
    return %c0_i32, %c0_i32_0 : i32, i32
  }
  func.func @transform_3(%arg0: i32) -> (i32, i32) {
    %c0_i32 = arith.constant 0 : i32
    %c0_i32_0 = arith.constant 0 : i32
    %c0_i32_1 = arith.constant 0 : i32
    return %c0_i32, %c0_i32_0 : i32, i32
  }
  func.func @transform_4(%arg0: i32) -> (i32, i32) {
    %c0_i32 = arith.constant 0 : i32
    %c0_i32_0 = arith.constant 0 : i32
    %c0_i32_1 = arith.constant 0 : i32
    return %c0_i32, %c0_i32_0 : i32, i32
  }
  func.func @transform_5(%arg0: i32) -> (i32, i32) {
    %c0_i32 = arith.constant 0 : i32
    %c0_i32_0 = arith.constant 0 : i32
    %c0_i32_1 = arith.constant 0 : i32
    return %c0_i32, %c0_i32_0 : i32, i32
  }
  func.func @transform_6(%arg0: i32) -> (i32, i32, i32) {
    %c0_i32 = arith.constant 0 : i32
    %c0_i32_0 = arith.constant 0 : i32
    %c0_i32_1 = arith.constant 0 : i32
    return %arg0, %c0_i32, %c0_i32_0 : i32, i32, i32
  }
}

</mosaic_0001>

<llo_original>
// kernel: tpu_custom_call.1
$region0: #{tpu_custom_call.1}
  #allocation0 [shape = 'u32[]', space=smem, size = 0x4, offset = 0x4, fixed_abs, tag = 'smem constant byte address 0x4 - core index']
  #allocation1 [shape = 'u32[144,128]{1,0:T(1,128)}', space=vmem, size = 0x12000, scoped, tag = 'internal scratch']
  #allocation2 [shape = 'f32[1]{0:T(128)S(6)}', space=smem, size = 0x200, scoped, tag = 'scoped memory for tpu_custom_call.1']
  %s0 = inlined_call_operand.<no memory space> [shape: f32[1], index: 0, kind: input, shape index: {}]
  %s1 = inlined_call_operand.hbm [shape: f32[2,4,256], index: 1, kind: input, shape index: {}]
  %s2 = inlined_call_operand.vmem [shape: f32[4,4], index: 2, kind: input, shape index: {}]
  %s3 = inlined_call_operand.vmem [shape: f32[1,4], index: 3, kind: input, shape index: {}]
  %s4 = inlined_call_operand.vmem [shape: f32[4,4], index: 4, kind: input, shape index: {}]
  %s5 = inlined_call_operand.vmem [shape: f32[1,4], index: 5, kind: input, shape index: {}]
  %s6 = inlined_call_operand.hbm [shape: f32[2,4,256], index: 6, kind: output, shape index: {}]
  %s7 = sld [smem:[#allocation0]]
  $region61: #{tpu_custom_call.1} parent=0
    _
  %s9 = ssub.s32 1, %s7
  %s10 = scalar_select 0, %s9, %s7
  %11 = sst [smem:[#allocation2]] %s0
  $region1: #{tpu_custom_call.1} parent=0
    #allocation3 [shape = 'u8[8192]{0}', space=vmem, size = 0x2000, scoped, tag = 'input window, operand 1']
    #allocation4 [shape = 's32[2]{0}', space=sflag, size = 0x8, scoped, tag = 'scoped memory for tpu_custom_call.1']
    #allocation5 [shape = 's32[2]{0}', space=sflag, size = 0x8, scoped, tag = 'scoped memory for tpu_custom_call.1']
    #allocation6 [shape = 'u8[8192]{0}', space=vmem, size = 0x2000, scoped, tag = 'output window, operand 0']
    %12 = vsyncpa [#allocation4], 0
    %s13 = scalar_lea.sflag [#allocation4], 1
    %14 = vsyncpa %s13, 0
    %15 = vsyncpa [#allocation5], 0
    %s16 = scalar_lea.sflag [#allocation5], 1
    %17 = vsyncpa %s16, 0
    loop: start=0, step=1, limit=4
    $region2: #{tpu_custom_call.1} parent=1 // loop_pre_header
      _
    $region3: #{tpu_custom_call.1} parent=1 // loop_header
      %s19 = sphi 0, %s23
      %p20 = scmp.ge.s32.totalorder %s19, 4
      %s27 = sphi 0, %s27
      %s29 = sphi 0, %s27
      %s30 = sphi 0, %s29
      %s44 = sphi 0, %s30
      %s50 = sphi 0, %s52
      %s53 = sphi 0, %s50
      %s54 = sphi 0, %s53
      %s70 = sphi 0, %s54
      %s74 = sphi 0, %s74
      %s76 = sphi 0, %s74
      %s77 = sphi 0, %s76
      %s91 = sphi 0, %s77
      %s95 = sphi 0, %s95
      %s97 = sphi 0, %s95
      %s98 = sphi 0, %s97
      %s112 = sphi 0, %s98
      %s116 = sphi 0, %s116
      %s118 = sphi 0, %s116
      %s119 = sphi 0, %s118
      %s133 = sphi 0, %s119
      %s137 = sphi 0, %s137
      %s139 = sphi 0, %s137
      %s140 = sphi 0, %s139
      %s154 = sphi 0, %s140
      %s160 = sphi 0, %s162
      %s163 = sphi 0, %s160
      %s164 = sphi 0, %s163
      %s180 = sphi 0, %s164
    $region4: #{tpu_custom_call.1} parent=1 // loop_header_branch
      %22 = sbr.rel (%p20) target = $region8
    $region5: #{tpu_custom_call.1} parent=1 // loop_body
      %s24 = ssub.s32 %s19, 1
      %s25 = ssub.s32 %s19, 2
      %s26 = sadd.s32 %s19, 1
      %s28 = sadd.s32 %s27, 1
      %p31 = scmp.eq.s32.totalorder %s19, 1
      %p32 = scmp.ne.s32.totalorder %s27, %s29
      %p33 = scmp.eq.s32.totalorder %s19, 0
      %p34 = por %p32, %p33
      %p35 = scmp.ne.s32.totalorder %s27, %s29
      %p36 = scmp.eq.s32.totalorder %s24, 1
      %p37 = por %p35, %p36
      %p38 = scmp.ne.s32.totalorder %s29, %s30
      %p39 = scmp.eq.s32.totalorder %s24, 0
      %p40 = por %p38, %p39
      %p41 = scmp.ne.s32.totalorder %s29, %s30
      %p42 = scmp.eq.s32.totalorder %s25, 1
      %p43 = por %p41, %p42
      %p45 = scmp.ne.s32.totalorder %s30, %s44
      %p46 = scmp.eq.s32.totalorder %s25, 0
      %p47 = por %p45, %p46
      %s48 = ssub.s32 %s19, %s26
      %p49 = scmp.eq.s32.totalorder %s48, 0
      %s51 = sadd.s32 %s50, 1
      %s52 = scalar_select %p49, %s50, %s51
      %p55 = pneg %p49
      %p56 = scmp.eq.s32.totalorder %s19, 1
      %p57 = por %p55, %p56
      %p58 = scmp.ne.s32.totalorder %s50, %s53
      %p59 = scmp.eq.s32.totalorder %s19, 0
      %p60 = por %p58, %p59
      %p61 = scmp.ne.s32.totalorder %s50, %s53
      %p62 = scmp.eq.s32.totalorder %s24, 1
      %p63 = por %p61, %p62
      %p64 = scmp.ne.s32.totalorder %s53, %s54
      %p65 = scmp.eq.s32.totalorder %s24, 0
      %p66 = por %p64, %p65
      %p67 = scmp.ne.s32.totalorder %s53, %s54
      %p68 = scmp.eq.s32.totalorder %s25, 1
      %p69 = por %p67, %p68
      %p71 = scmp.ne.s32.totalorder %s54, %s70
      %p72 = scmp.eq.s32.totalorder %s25, 0
      %p73 = por %p71, %p72
      %s75 = sadd.s32 %s74, 1
      %p78 = scmp.eq.s32.totalorder %s19, 1
      %p79 = scmp.ne.s32.totalorder %s74, %s76
      %p80 = scmp.eq.s32.totalorder %s19, 0
      %p81 = por %p79, %p80
      %p82 = scmp.ne.s32.totalorder %s74, %s76
      %p83 = scmp.eq.s32.totalorder %s24, 1
      %p84 = por %p82, %p83
      %p85 = scmp.ne.s32.totalorder %s76, %s77
      %p86 = scmp.eq.s32.totalorder %s24, 0
      %p87 = por %p85, %p86
      %p88 = scmp.ne.s32.totalorder %s76, %s77
      %p89 = scmp.eq.s32.totalorder %s25, 1
      %p90 = por %p88, %p89
      %p92 = scmp.ne.s32.totalorder %s77, %s91
      %p93 = scmp.eq.s32.totalorder %s25, 0
      %p94 = por %p92, %p93
      %s96 = sadd.s32 %s95, 1
      %p99 = scmp.eq.s32.totalorder %s19, 1
      %p100 = scmp.ne.s32.totalorder %s95, %s97
      %p101 = scmp.eq.s32.totalorder %s19, 0
      %p102 = por %p100, %p101
      %p103 = scmp.ne.s32.totalorder %s95, %s97
      %p104 = scmp.eq.s32.totalorder %s24, 1
      %p105 = por %p103, %p104
      %p106 = scmp.ne.s32.totalorder %s97, %s98
      %p107 = scmp.eq.s32.totalorder %s24, 0
      %p108 = por %p106, %p107
      %p109 = scmp.ne.s32.totalorder %s97, %s98
      %p110 = scmp.eq.s32.totalorder %s25, 1
      %p111 = por %p109, %p110
      %p113 = scmp.ne.s32.totalorder %s98, %s112
      %p114 = scmp.eq.s32.totalorder %s25, 0
      %p115 = por %p113, %p114
      %s117 = sadd.s32 %s116, 1
      %p120 = scmp.eq.s32.totalorder %s19, 1
      %p121 = scmp.ne.s32.totalorder %s116, %s118
      %p122 = scmp.eq.s32.totalorder %s19, 0
      %p123 = por %p121, %p122
      %p124 = scmp.ne.s32.totalorder %s116, %s118
      %p125 = scmp.eq.s32.totalorder %s24, 1
      %p126 = por %p124, %p125
      %p127 = scmp.ne.s32.totalorder %s118, %s119
      %p128 = scmp.eq.s32.totalorder %s24, 0
      %p129 = por %p127, %p128
      %p130 = scmp.ne.s32.totalorder %s118, %s119
      %p131 = scmp.eq.s32.totalorder %s25, 1
      %p132 = por %p130, %p131
      %p134 = scmp.ne.s32.totalorder %s119, %s133
      %p135 = scmp.eq.s32.totalorder %s25, 0
      %p136 = por %p134, %p135
      %s138 = sadd.s32 %s137, 1
      %p141 = scmp.eq.s32.totalorder %s19, 1
      %p142 = scmp.ne.s32.totalorder %s137, %s139
      %p143 = scmp.eq.s32.totalorder %s19, 0
      %p144 = por %p142, %p143
      %p145 = scmp.ne.s32.totalorder %s137, %s139
      %p146 = scmp.eq.s32.totalorder %s24, 1
      %p147 = por %p145, %p146
      %p148 = scmp.ne.s32.totalorder %s139, %s140
      %p149 = scmp.eq.s32.totalorder %s24, 0
      %p150 = por %p148, %p149
      %p151 = scmp.ne.s32.totalorder %s139, %s140
      %p152 = scmp.eq.s32.totalorder %s25, 1
      %p153 = por %p151, %p152
      %p155 = scmp.ne.s32.totalorder %s140, %s154
      %p156 = scmp.eq.s32.totalorder %s25, 0
      %p157 = por %p155, %p156
      %s158 = ssub.s32 %s19, %s26
      %p159 = scmp.eq.s32.totalorder %s158, 0
      %s161 = sadd.s32 %s160, 1
      %s162 = scalar_select %p159, %s160, %s161
      %p165 = pneg %p159
      %p166 = scmp.eq.s32.totalorder %s19, 1
      %p167 = por %p165, %p166
      %p168 = scmp.ne.s32.totalorder %s160, %s163
      %p169 = scmp.eq.s32.totalorder %s19, 0
      %p170 = por %p168, %p169
      %p171 = scmp.ne.s32.totalorder %s160, %s163
      %p172 = scmp.eq.s32.totalorder %s24, 1
      %p173 = por %p171, %p172
      %p174 = scmp.ne.s32.totalorder %s163, %s164
      %p175 = scmp.eq.s32.totalorder %s24, 0
      %p176 = por %p174, %p175
      %p177 = scmp.ne.s32.totalorder %s163, %s164
      %p178 = scmp.eq.s32.totalorder %s25, 1
      %p179 = por %p177, %p178
      %p181 = scmp.ne.s32.totalorder %s164, %s180
      %p182 = scmp.eq.s32.totalorder %s25, 0
      %p183 = por %p181, %p182
      %p184 = scmp.le.s32.totalorder 1, %s19
      %p185 = scmp.lt.s32.totalorder %s19, 3
      %p186 = pnand %p184, %p185
      %p187 = pneg %p186
      // Predicated region
      $region9: #{tpu_custom_call.1} parent=5 // pred_check
        _
      $region10: #{tpu_custom_call.1} parent=5 // pred_check_branch
        %189 = sbr.rel (%p186) target = $region12
      $region11: #{tpu_custom_call.1} parent=5 // pred_region
        %s190 = ssub.s32 %s19, 1
        // Predicated region
        $region13: #{tpu_custom_call.1} parent=11 // pred_check
          %p191 = pneg %p40
        $region14: #{tpu_custom_call.1} parent=11 // pred_check_branch
          %193 = sbr.rel (%p191) target = $region16
        $region15: #{tpu_custom_call.1} parent=11 // pred_region
          _
        $region16: #{tpu_custom_call.1} parent=11 // pred_fallthru
          _
        // Predicated region
        $region17: #{tpu_custom_call.1} parent=11 // pred_check
          %p194 = pneg %p87
        $region18: #{tpu_custom_call.1} parent=11 // pred_check_branch
          %196 = sbr.rel (%p194) target = $region20
        $region19: #{tpu_custom_call.1} parent=11 // pred_region
          _
        $region20: #{tpu_custom_call.1} parent=11 // pred_fallthru
          _
        // Predicated region
        $region21: #{tpu_custom_call.1} parent=11 // pred_check
          %p197 = pneg %p108
        $region22: #{tpu_custom_call.1} parent=11 // pred_check_branch
          %199 = sbr.rel (%p197) target = $region24
        $region23: #{tpu_custom_call.1} parent=11 // pred_region
          _
        $region24: #{tpu_custom_call.1} parent=11 // pred_fallthru
          _
        // Predicated region
        $region25: #{tpu_custom_call.1} parent=11 // pred_check
          %p200 = pneg %p129
        $region26: #{tpu_custom_call.1} parent=11 // pred_check_branch
          %202 = sbr.rel (%p200) target = $region28
        $region27: #{tpu_custom_call.1} parent=11 // pred_region
          _
        $region28: #{tpu_custom_call.1} parent=11 // pred_fallthru
          _
        // Predicated region
        $region29: #{tpu_custom_call.1} parent=11 // pred_check
          %p203 = pneg %p150
        $region30: #{tpu_custom_call.1} parent=11 // pred_check_branch
          %205 = sbr.rel (%p203) target = $region32
        $region31: #{tpu_custom_call.1} parent=11 // pred_region
          _
        $region32: #{tpu_custom_call.1} parent=11 // pred_fallthru
          _
      $region12: #{tpu_custom_call.1} parent=5 // pred_fallthru
        _
      %p206 = scmp.lt.s32.totalorder %s19, 2
      // Predicated region
      $region33: #{tpu_custom_call.1} parent=5 // pred_check
        %p207 = pneg %p206
      $region34: #{tpu_custom_call.1} parent=5 // pred_check_branch
        %209 = sbr.rel (%p207) target = $region36
      $region35: #{tpu_custom_call.1} parent=5 // pred_region
        // Predicated region
        $region37: #{tpu_custom_call.1} parent=35 // pred_check
          %p210 = pneg %p60
        $region38: #{tpu_custom_call.1} parent=35 // pred_check_branch
          %212 = sbr.rel (%p210) target = $region40
        $region39: #{tpu_custom_call.1} parent=35 // pred_region
          %s213 = sand.u32 %s50, 1
          %s214 = scalar_lea.sflag [#allocation4], %s213
          %s215 = sand.u32 %s50, 1
          %s216 = smul.addr %s215, 8
          %s217 = scalar_lea.vmem [#allocation3], %s216
          %s219 = ssub.s32 128, 128
          %220 = vsyncadd %s214, %s219
          %s221 = smul.addr %s19, 2
          %s222 = smul.addr %s221, 64
          %s223 = scalar_lea.hbm %s1, %s222
          %s225 = sshll.u32 %s217, 4
          %s226 = int_to_ptr.vmem [resolvable:$true] %s225
          %228 = dma.hbm_to_vmem [thread:$0]  %s223, 128, %s226, %s214
        $region40: #{tpu_custom_call.1} parent=35 // pred_fallthru
          _
      $region36: #{tpu_custom_call.1} parent=5 // pred_fallthru
        _
      %p229 = scmp.le.s32.totalorder 1, %s19
      %p230 = scmp.lt.s32.totalorder %s19, 3
      %p231 = pnand %p229, %p230
      %p232 = pneg %p231
      // Predicated region
      $region41: #{tpu_custom_call.1} parent=5 // pred_check
        _
      $region42: #{tpu_custom_call.1} parent=5 // pred_check_branch
        %234 = sbr.rel (%p231) target = $region44
      $region43: #{tpu_custom_call.1} parent=5 // pred_region
        %s235 = ssub.s32 %s19, 1
        %s236 = sand.u32 %s53, 1
        %s237 = scalar_lea.sflag [#allocation4], %s236
        %s238 = sand.u32 %s53, 1
        %s239 = smul.addr %s238, 8
        %s240 = scalar_lea.vmem [#allocation3], %s239
        // Predicated region
        $region45: #{tpu_custom_call.1} parent=43 // pred_check
          %p241 = pneg %p66
        $region46: #{tpu_custom_call.1} parent=43 // pred_check_branch
          %243 = sbr.rel (%p241) target = $region48
        $region47: #{tpu_custom_call.1} parent=43 // pred_region
          %244 = dma.done %s237, 128
        $region48: #{tpu_custom_call.1} parent=43 // pred_fallthru
          _
        %p245 = pneg %p40
        %p246 = pneg %p37
        %s247 = sand.u32 %s53, 1
        %s248 = scalar_lea.sflag [#allocation4], %s247
        %s249 = sand.u32 %s53, 1
        %s250 = smul.addr %s249, 8
        %s251 = scalar_lea.vmem [#allocation3], %s250
        %p252 = pneg %p66
        %p253 = pneg %p63
        %p254 = pneg %p87
        %p255 = pneg %p84
        %p256 = pneg %p108
        %p257 = pneg %p105
        %p258 = pneg %p129
        %p259 = pneg %p126
        %p260 = pneg %p150
        %p261 = pneg %p147
        %p262 = pneg %p176
        %p263 = pneg %p173
        %s264 = sand.u32 %s163, 1
        %s265 = scalar_lea.sflag [#allocation5], %s264
        %s266 = sand.u32 %s163, 1
        %s267 = smul.addr %s266, 8
        %s268 = scalar_lea.vmem [#allocation6], %s267
        %v269 = vld [vmem:[%s240] sm:$0xff]
        %v271 = vcombine.high %v269, %v269
        %vm273 = vcmask 1043456
        %v274 = vsel %vm273, %v269, 0.0
        %v275 = vsel %vm273, %v271, 0.0
        %v276 = vadd.f32 %v274, %v275
        %277 = vadd.xlane.f32.xlu0 %v276
        %v278 = vpop.xlane.xlu0 %277
        %v279 = vrcp.pop 256.0
        %v280 = vmul.f32 %v278, %v279
        %v281 = vld [vmem:[%s2] sm:$0xf]
        %v283 = vlaneseq
        %v284 = vshrl.u32 %v283, 7
        %v285 = vsub.s32 0, %v284
        %v286 = vrot.slane %v281, %v285
        %288 = vbcast.lane.b32.xlu0 %v286, 256
        %v289 = vpop.permute.xlu0 %288
        %v290 = vlaneseq
        %v291 = vshrl.u32 %v290, 7
        %v292 = vsub.s32 1, %v291
        %v293 = vrot.slane %v281, %v292
        %295 = vbcast.lane.b32.xlu0 %v293, 256
        %v296 = vpop.permute.xlu0 %295
        %v297 = vlaneseq
        %v298 = vshrl.u32 %v297, 7
        %v299 = vsub.s32 2, %v298
        %v300 = vrot.slane %v281, %v299
        %302 = vbcast.lane.b32.xlu0 %v300, 256
        %v303 = vpop.permute.xlu0 %302
        %v304 = vlaneseq
        %v305 = vshrl.u32 %v304, 7
        %v306 = vsub.s32 3, %v305
        %v307 = vrot.slane %v281, %v306
        %309 = vbcast.lane.b32.xlu0 %v307, 256
        %v310 = vpop.permute.xlu0 %309
        %v315 = vmul.f32 %v280, %v289
        %v316 = vmul.f32 %v280, %v296
        %v317 = vmul.f32 %v280, %v303
        %v318 = vmul.f32 %v280, %v310
        %323 = vset.pattern.permute.xlu0 0
        %324 = vperm.xlu0 %323, %v315
        %v325 = vpop.permute.xlu0 %324
        %326 = vset.pattern.permute.xlu0 0
        %327 = vperm.xlu0 %326, %v316
        %v328 = vpop.permute.xlu0 %327
        %329 = vset.pattern.permute.xlu0 0
        %330 = vperm.xlu0 %329, %v317
        %v331 = vpop.permute.xlu0 %330
        %332 = vset.pattern.permute.xlu0 0
        %333 = vperm.xlu0 %332, %v318
        %v334 = vpop.permute.xlu0 %333
        %v335 = vlaneseq
        %v336 = vand.u32 %v335, 127
        %v337 = vlaneseq
        %v338 = vshrl.u32 %v337, 7
        %v339 = vsub.s32 %v336, %v338
        %v340 = vrot.slane %v325, %v339
        %v341 = vlaneseq
        %v342 = vshrl.u32 %v341, 7
        %v343 = vsub.s32 %v336, %v342
        %v344 = vrot.slane %v328, %v343
        %v345 = vlaneseq
        %v346 = vshrl.u32 %v345, 7
        %v347 = vsub.s32 %v336, %v346
        %v348 = vrot.slane %v331, %v347
        %v349 = vlaneseq
        %v350 = vshrl.u32 %v349, 7
        %v351 = vsub.s32 %v336, %v350
        %v352 = vrot.slane %v334, %v351
        %vm353 = vcmask 1041409
        %v354 = vsel %vm353, %v344, %v340
        %vm355 = vcmask 1042434
        %v356 = vsel %vm355, %v348, %v354
        %vm357 = vcmask 1043459
        %v358 = vsel %vm357, %v352, %v356
        %vm360 = vcmask 27648
        %v361 = vsel %vm360, %v358, 0.0
        %362 = vadd.xlane.f32.xlu0 %v361
        %v363 = vpop.xlane.xlu0 %362
        %v364 = vld [vmem:[%s3] sm:$0x1]
        %v366 = vlaneseq
        %v367 = vshrl.u32 %v366, 7
        %v368 = vsub.s32 0, %v367
        %v369 = vrot.slane %v364, %v368
        %371 = vbcast.lane.b32.xlu0 %v369, 256
        %v372 = vpop.permute.xlu0 %371
        %v374 = vadd.f32 %v363, %v372
        %s375 = sld [smem:[#allocation2]]
        %vm376 = vcmp.ge.f32.partialorder %v374, 0.0
        %v377 = vstv %s375
        %v378 = vmul.f32 %v377, %v374
        %v379 = vsel %vm376, %v374, %v378
        %v380 = vld [vmem:[%s4] sm:$0xf]
        %v382 = vlaneseq
        %v383 = vshrl.u32 %v382, 7
        %v384 = vsub.s32 0, %v383
        %v385 = vrot.slane %v380, %v384
        %387 = vbcast.lane.b32.xlu0 %v385, 256
        %v388 = vpop.permute.xlu0 %387
        %v389 = vlaneseq
        %v390 = vshrl.u32 %v389, 7
        %v391 = vsub.s32 1, %v390
        %v392 = vrot.slane %v380, %v391
        %394 = vbcast.lane.b32.xlu0 %v392, 256
        %v395 = vpop.permute.xlu0 %394
        %v396 = vlaneseq
        %v397 = vshrl.u32 %v396, 7
        %v398 = vsub.s32 2, %v397
        %v399 = vrot.slane %v380, %v398
        %401 = vbcast.lane.b32.xlu0 %v399, 256
        %v402 = vpop.permute.xlu0 %401
        %v403 = vlaneseq
        %v404 = vshrl.u32 %v403, 7
        %v405 = vsub.s32 3, %v404
        %v406 = vrot.slane %v380, %v405
        %408 = vbcast.lane.b32.xlu0 %v406, 256
        %v409 = vpop.permute.xlu0 %408
        %v414 = vmul.f32 %v379, %v388
        %v415 = vmul.f32 %v379, %v395
        %v416 = vmul.f32 %v379, %v402
        %v417 = vmul.f32 %v379, %v409
        %422 = vset.pattern.permute.xlu0 0
        %423 = vperm.xlu0 %422, %v414
        %v424 = vpop.permute.xlu0 %423
        %425 = vset.pattern.permute.xlu0 0
        %426 = vperm.xlu0 %425, %v415
        %v427 = vpop.permute.xlu0 %426
        %428 = vset.pattern.permute.xlu0 0
        %429 = vperm.xlu0 %428, %v416
        %v430 = vpop.permute.xlu0 %429
        %431 = vset.pattern.permute.xlu0 0
        %432 = vperm.xlu0 %431, %v417
        %v433 = vpop.permute.xlu0 %432
        %v434 = vlaneseq
        %v435 = vshrl.u32 %v434, 7
        %v436 = vsub.s32 %v336, %v435
        %v437 = vrot.slane %v424, %v436
        %v438 = vlaneseq
        %v439 = vshrl.u32 %v438, 7
        %v440 = vsub.s32 %v336, %v439
        %v441 = vrot.slane %v427, %v440
        %v442 = vlaneseq
        %v443 = vshrl.u32 %v442, 7
        %v444 = vsub.s32 %v336, %v443
        %v445 = vrot.slane %v430, %v444
        %v446 = vlaneseq
        %v447 = vshrl.u32 %v446, 7
        %v448 = vsub.s32 %v336, %v447
        %v449 = vrot.slane %v433, %v448
        %v450 = vsel %vm353, %v441, %v437
        %v451 = vsel %vm355, %v445, %v450
        %v452 = vsel %vm357, %v449, %v451
        %v454 = vsel %vm360, %v452, 0.0
        %455 = vadd.xlane.f32.xlu0 %v454
        %v456 = vpop.xlane.xlu0 %455
        %v457 = vld [vmem:[%s5] sm:$0x1]
        %v459 = vlaneseq
        %v460 = vshrl.u32 %v459, 7
        %v461 = vsub.s32 0, %v460
        %v462 = vrot.slane %v457, %v461
        %464 = vbcast.lane.b32.xlu0 %v462, 256
        %v465 = vpop.permute.xlu0 %464
        %v467 = vadd.f32 %v456, %v465
        %v468 = vadd.f32 %v467, 3.0
        %v469 = vmax.f32 %v468, 0.0
        %v470 = vmin.f32 %v469, 6.0
        %v471 = vmul.f32 %v470, 0.16666667
        %473 = vset.pattern.permute.xlu0 0
        %474 = vperm.xlu0 %473, %v471
        %v475 = vpop.permute.xlu0 %474
        %v477 = vunpack.c.l.s4 839922192
        %v478 = vunpack.c.0.s8 %v477
        %v479 = vlaneseq
        %v480 = vshrl.u32 %v479, 7
        %v481 = vsub.s32 %v478, %v480
        %v482 = vrot.slane %v475, %v481
        %v484 = vmul.f32 %v269, %v482
        %485 = vst [vmem:[%s268] sm:$0xff] %v484
        %s486 = sand.u32 %s163, 1
        %s487 = scalar_lea.sflag [#allocation5], %s486
        %s488 = sand.u32 %s163, 1
        %s489 = smul.addr %s488, 8
        %s490 = scalar_lea.vmem [#allocation6], %s489
        // Predicated region
        $region49: #{tpu_custom_call.1} parent=43 // pred_check
          %p491 = pneg %p173
        $region50: #{tpu_custom_call.1} parent=43 // pred_check_branch
          %493 = sbr.rel (%p491) target = $region52
        $region51: #{tpu_custom_call.1} parent=43 // pred_region
          %s495 = ssub.s32 128, 128
          %496 = vsyncadd %s487, %s495
          %s497 = smul.addr %s24, 2
          %s498 = smul.addr %s497, 64
          %s499 = scalar_lea.hbm %s6, %s498
          %s501 = sshll.u32 %s490, 4
          %s502 = int_to_ptr.vmem [resolvable:$true] %s501
          %504 = dma.vmem_to_hbm [thread:$0]  %s502, 128, %s499, %s487
        $region52: #{tpu_custom_call.1} parent=43 // pred_fallthru
          _
      $region44: #{tpu_custom_call.1} parent=5 // pred_fallthru
        _
      %p505 = scmp.le.s32.totalorder 2, %s19
      // Predicated region
      $region53: #{tpu_custom_call.1} parent=5 // pred_check
        %p506 = pneg %p505
      $region54: #{tpu_custom_call.1} parent=5 // pred_check_branch
        %508 = sbr.rel (%p506) target = $region56
      $region55: #{tpu_custom_call.1} parent=5 // pred_region
        %s509 = ssub.s32 %s19, 2
        // Predicated region
        $region57: #{tpu_custom_call.1} parent=55 // pred_check
          %p510 = pneg %p179
        $region58: #{tpu_custom_call.1} parent=55 // pred_check_branch
          %512 = sbr.rel (%p510) target = $region60
        $region59: #{tpu_custom_call.1} parent=55 // pred_region
          %s513 = sand.u32 %s164, 1
          %s514 = scalar_lea.sflag [#allocation5], %s513
          %s515 = sand.u32 %s164, 1
          %s516 = smul.addr %s515, 8
          %s517 = scalar_lea.vmem [#allocation6], %s516
          %518 = dma.done %s514, 128
        $region60: #{tpu_custom_call.1} parent=55 // pred_fallthru
          _
      $region56: #{tpu_custom_call.1} parent=5 // pred_fallthru
        _
    $region6: #{tpu_custom_call.1} parent=1 // loop_footer
      %s23 = sadd.s32 1, %s19
    $region7: #{tpu_custom_call.1} parent=1 // loop_footer_branch
      %18 = sbr.rel target = $region3
    $region8: #{tpu_custom_call.1} parent=1 // loop_exit
      _
    %519 = vsyncpa [#allocation4], 1
    %s520 = scalar_lea.sflag [#allocation4], 1
    %521 = vsyncpa %s520, 1
    %522 = vsyncpa [#allocation5], 1
    %s523 = scalar_lea.sflag [#allocation5], 1
    %524 = vsyncpa %s523, 1

</llo_original>
